<compile_context>
chip_gen: v5e
topology: v5e:2x2
jax: 0.10.0
libtpu: 0.0.40
codegen_flags: <defaults>
</compile_context>

<pallas_src>
import functools

import jax
import jax.numpy as jnp
from jax.experimental import pallas as pl
from jax.experimental.pallas import tpu as pltpu


def _normalize_kernel(consts_ref, x_ref, o_ref, *, block_rows):
    # consts_ref: (R, 2) VMEM-resident; column 0 = -mean[row], column 1 = 1/std[row].
    # x_ref / o_ref: (block_rows, lane_chunk) lane-dense tile.
    r0 = pl.multiple_of(pl.program_id(0) * block_rows, block_rows)
    c = consts_ref[pl.ds(r0, block_rows), :]                  # (block_rows, 2)
    o_ref[...] = ((x_ref[...] + c[:, 0:1]) * c[:, 1:2]).astype(o_ref.dtype)


def _divisors(total, quantum):
    """Divisors of `total` that are multiples of `quantum`, plus the full extent."""
    cands = [d for d in range(quantum, total + 1, quantum) if total % d == 0]
    if total not in cands:
        cands.append(total)  # full-extent block is always legal
    return sorted(set(cands))


def _choose_tiles(rows, lanes, itemsize,
                  target_bytes=4 << 20, min_tile_bytes=1 << 20, min_steps=4):
    """Pick (block_rows, lane_chunk): 8/128-quantized divisors, tile ~target_bytes,
    and prefer >= min_steps grid steps while tiles stay >= min_tile_bytes."""
    row_cands = _divisors(rows, 8) if rows >= 8 else [rows]
    lane_cands = _divisors(lanes, 128)

    def nbytes(br_, lc_):
        return br_ * lc_ * itemsize

    # Widest lane chunk such that even the smallest row block fits the budget.
    lane_fit = [lc for lc in lane_cands if nbytes(row_cands[0], lc) <= target_bytes]
    lc = max(lane_fit) if lane_fit else lane_cands[0]
    # Tallest row block that fits the budget at that lane width.
    row_fit = [br for br in row_cands if nbytes(br, lc) <= target_bytes]
    br = max(row_fit) if row_fit else row_cands[0]

    def steps(br_, lc_):
        return (rows // br_) * (lanes // lc_)

    # Prefer more grid steps (megacore split + DMA/compute overlap) as long as
    # tiles stay large enough to keep per-step overhead negligible.
    while steps(br, lc) < min_steps:
        smaller_rows = [d for d in row_cands if d < br and nbytes(d, lc) >= min_tile_bytes]
        if smaller_rows:
            br = max(smaller_rows)
            continue
        smaller_lanes = [d for d in lane_cands if d < lc and nbytes(br, d) >= min_tile_bytes]
        if smaller_lanes:
            lc = max(smaller_lanes)
            continue
        break
    return br, lc


def normalize_layer(x, mean, std, *, out_dtype=None):
    """Pallas equivalent of Normalize_layer.forward: (x - mean[c]) / std[c].

    x: (N, C, H, W); mean, std: (C,).
    """
    N, C, H, W = x.shape
    out_dtype = x.dtype if out_dtype is None else out_dtype
    R, L = N * C, H * W
    itemsize = jnp.dtype(x.dtype).itemsize

    # NCHW is row-major contiguous as (N*C, H*W): metadata-only reshape.
    # TODO(synk): in a full model graph, verify XLA keeps this reshape free for
    # the producer's layout, and ideally fuse this op into the first conv.
    x2 = x.reshape(R, L)

    # Pad the lane dim up to a multiple of 128 so all stores are unmasked.
    Lp = ((L + 127) // 128) * 128
    if Lp != L:
        x2 = jnp.pad(x2, ((0, 0), (0, Lp - L)))

    # Packed per-row constants: row r -> channel r % C; col 0 = -mean, col 1 = 1/std.
    neg_mean = jnp.tile(-mean.astype(jnp.float32), N)
    inv_std = jnp.tile(1.0 / std.astype(jnp.float32), N)
    consts = jnp.stack([neg_mean, inv_std], axis=1).astype(x.dtype)  # (R, 2)

    br, lc = _choose_tiles(R, Lp, itemsize)
    grid = (R // br, Lp // lc)

    out2 = pl.pallas_call(
        functools.partial(_normalize_kernel, block_rows=br),
        out_shape=jax.ShapeDtypeStruct((R, Lp), out_dtype),
        grid=grid,
        in_specs=[
            # Resident constants: block index never changes -> DMA'd once, kept in VMEM.
            pl.BlockSpec((R, 2), lambda i, j: (0, 0)),
            pl.BlockSpec((br, lc), lambda i, j: (i, j)),
        ],
        out_specs=pl.BlockSpec((br, lc), lambda i, j: (i, j)),
        compiler_params=pltpu.CompilerParams(
            dimension_semantics=("parallel", "parallel"),
            vmem_limit_bytes=48 << 20,
        ),
        cost_estimate=pl.CostEstimate(
            flops=2 * R * Lp,
            transcendentals=0,
            bytes_accessed=(2 * R * Lp + 2 * R) * itemsize,
        ),
        # NOTE: pass input_output_aliases={1: 0} iff x2 is donatable (it is not
        # here: x is reused below for the reference check).
    )(consts, x2)

    if Lp != L:
        out2 = out2[:, :L]
    return out2.reshape(N, C, H, W)


if __name__ == "__main__":
    # Small shapes consistent with an image-classification normalize layer.
    N, C, H, W = 2, 4, 16, 16

    key = jax.random.PRNGKey(0)
    x = jax.random.normal(key, (N, C, H, W), dtype=jnp.float32)

    # Deterministic per-channel mean/std (module __init__ takes `mean`, `std`
    # lists of length C; synthesized in-script).
    mean = jnp.array([0.485, 0.456, 0.406, 0.5][:C], dtype=jnp.float32)
    std = jnp.array([0.229, 0.224, 0.225, 0.25][:C], dtype=jnp.float32)

    out = jax.block_until_ready(normalize_layer(x, mean, std))

    # Reference in plain JAX (same semantics as input.sub(mean).div(std)).
    ref = (x - mean[None, :, None, None]) / std[None, :, None, None]
    assert jnp.allclose(out, ref, atol=1e-5, rtol=1e-5), "mismatch vs reference"

    print("KERNEL_OK")
</pallas_src>

<mosaic_0001>
module attributes {stable_mosaic.version = 11 : i64} {
  func.func @_normalize_kernel(%arg0: i32, %arg1: i32, %arg2: memref<8x2xf32, #tpu.memory_space<vmem>>, %arg3: memref<8x256xf32, #tpu.memory_space<vmem>>, %arg4: memref<8x256xf32, #tpu.memory_space<vmem>>) attributes {dimension_semantics = [#tpu.dimension_semantics<parallel>, #tpu.dimension_semantics<parallel>], iteration_bounds = array<i64: 1, 1>, scalar_prefetch = 0 : i64, scratch_operands = 0 : i64, tpu.core_type = #tpu.core_type<tc>, window_params = [{pipeline_mode = #tpu.pipeline_mode<synchronous>, transform_indices = @transform_0, window_bounds = array<i64: 8, 2>}, {transform_indices = @transform_1, window_bounds = array<i64: 8, 256>}, {transform_indices = @transform_2, window_bounds = array<i64: 8, 256>}]} {
    %c8_i32 = arith.constant 8 : i32
    %0 = arith.muli %arg0, %c8_i32 : i32
    %1 = tpu.assume_multiple %0, 8 : i32
    %2 = arith.index_cast %1 : i32 to index
    %c0 = arith.constant 0 : index
    %3 = vector.load %arg2[%2, %c0] : memref<8x2xf32, #tpu.memory_space<vmem>>, vector<8x2xf32>
    %c0_0 = arith.constant 0 : index
    %c0_1 = arith.constant 0 : index
    %4 = vector.load %arg3[%c0_0, %c0_1] : memref<8x256xf32, #tpu.memory_space<vmem>>, vector<8x256xf32>
    %5 = vector.extract_strided_slice %3 {offsets = [0, 0], sizes = [8, 1], strides = [1, 1]} : vector<8x2xf32> to vector<8x1xf32>
    %6 = vector.broadcast %5 : vector<8x1xf32> to vector<8x256xf32>
    %7 = arith.addf %4, %6 : vector<8x256xf32>
    %8 = vector.extract_strided_slice %3 {offsets = [0, 1], sizes = [8, 1], strides = [1, 1]} : vector<8x2xf32> to vector<8x1xf32>
    %9 = vector.broadcast %8 : vector<8x1xf32> to vector<8x256xf32>
    %10 = arith.mulf %7, %9 : vector<8x256xf32>
    %c0_2 = arith.constant 0 : index
    %c0_3 = arith.constant 0 : index
    %11 = vector.load %arg4[%c0_2, %c0_3] : memref<8x256xf32, #tpu.memory_space<vmem>>, vector<8x256xf32>
    tpu.vector_store %arg4[%c0_2, %c0_3], %10 {strides = array<i32>} : memref<8x256xf32, #tpu.memory_space<vmem>>, vector<8x256xf32>,
    return
  }
  func.func @transform_0(%arg0: i32, %arg1: i32) -> (i32, i32) {
    %c0_i32 = arith.constant 0 : i32
    %c0_i32_0 = arith.constant 0 : i32
    %c0_i32_1 = arith.constant 0 : i32
    return %c0_i32, %c0_i32_0 : i32, i32
  }
  func.func @transform_1(%arg0: i32, %arg1: i32) -> (i32, i32) {
    %c0_i32 = arith.constant 0 : i32
    return %arg0, %arg1 : i32, i32
  }
  func.func @transform_2(%arg0: i32, %arg1: i32) -> (i32, i32) {
    %c0_i32 = arith.constant 0 : i32
    return %arg0, %arg1 : i32, i32
  }
}

</mosaic_0001>

<llo_original>
// kernel: tpu_custom_call.1
$region0: #{tpu_custom_call.1}
  #allocation0 [shape = 'u32[]', space=smem, size = 0x4, offset = 0x4, fixed_abs, tag = 'smem constant byte address 0x4 - core index']
  #allocation1 [shape = 'u32[72,128]{1,0:T(1,128)}', space=vmem, size = 0x9000, scoped, tag = 'internal scratch']
  %s0 = inlined_call_operand.vmem [shape: f32[8,2], index: 0, kind: input, shape index: {}]
  %s1 = inlined_call_operand.hbm [shape: f32[8,256], index: 1, kind: input, shape index: {}]
  %s2 = inlined_call_operand.hbm [shape: f32[8,256], index: 2, kind: output, shape index: {}]
  %s3 = sld [smem:[#allocation0]]
  $region22: #{tpu_custom_call.1} parent=0
    _
  %s5 = ssub.s32 1, %s3
  %s6 = scalar_select 0, %s5, %s3
  $region1: #{tpu_custom_call.1} parent=0
    #allocation2 [shape = 'u8[8192]{0}', space=vmem, size = 0x2000, scoped, tag = 'input window, operand 1, single buffered']
    #allocation3 [shape = 's32[1]{0}', space=sflag, size = 0x4, scoped, tag = 'scoped memory for tpu_custom_call.1']
    #allocation4 [shape = 's32[1]{0}', space=sflag, size = 0x4, scoped, tag = 'scoped memory for tpu_custom_call.1']
    #allocation5 [shape = 'u8[8192]{0}', space=vmem, size = 0x2000, scoped, tag = 'output window, operand 0, single buffered']
    %7 = vsyncpa [#allocation3], 0
    %8 = vsyncpa [#allocation4], 0
    // Predicated region
    $region2: #{tpu_custom_call.1} parent=1 // pred_check
      _
    $region3: #{tpu_custom_call.1} parent=1 // pred_check_branch
      %10 = sbr.rel (0) target = $region5
    $region4: #{tpu_custom_call.1} parent=1 // pred_region
      _
    $region5: #{tpu_custom_call.1} parent=1 // pred_fallthru
      _
    // Predicated region
    $region6: #{tpu_custom_call.1} parent=1 // pred_check
      _
    $region7: #{tpu_custom_call.1} parent=1 // pred_check_branch
      %12 = sbr.rel (0) target = $region9
    $region8: #{tpu_custom_call.1} parent=1 // pred_region
      %14 = vsyncadd [#allocation3], 0
      %s16 = sshll.u32 %s1, 4
      %s17 = int_to_ptr.hbm [resolvable:$true] %s16
      %s18 = sshll.u32 [#allocation2], 4
      %s19 = int_to_ptr.vmem [resolvable:$true] %s18
      %21 = dma.hbm_to_vmem [thread:$0]  %s17, 256, %s19, [#allocation3]
    $region9: #{tpu_custom_call.1} parent=1 // pred_fallthru
      _
    // Predicated region
    $region10: #{tpu_custom_call.1} parent=1 // pred_check
      _
    $region11: #{tpu_custom_call.1} parent=1 // pred_check_branch
      %23 = sbr.rel (0) target = $region13
    $region12: #{tpu_custom_call.1} parent=1 // pred_region
      %25 = dma.done [#allocation3], 256
    $region13: #{tpu_custom_call.1} parent=1 // pred_fallthru
      _
    %s26 = smul.u32 0, 8
    %s27 = scalar_lea.vmem %s0, %s26
    %v28 = vld [vmem:[%s27] sm:$0xff]
    %v29 = vld [vmem:[#allocation2] sm:$0xff]
    %v30 = vld [vmem:[#allocation2 + $0x8] sm:$0xff]
    %32 = vset.pattern.permute.xlu0 0
    %33 = vperm.xlu0 %32, %v28
    %v34 = vpop.permute.xlu0 %33
    %v36 = vadd.f32 %v29, %v34
    %v37 = vadd.f32 %v30, %v34
    %38 = vset.pattern.permute.xlu0 1
    %39 = vperm.xlu0 %38, %v28
    %v40 = vpop.permute.xlu0 %39
    %v42 = vmul.f32 %v36, %v40
    %v43 = vmul.f32 %v37, %v40
    %44 = vst [vmem:[#allocation5] sm:$0xff] %v42
    %45 = vst [vmem:[#allocation5 + $0x8] sm:$0xff] %v43
    // Predicated region
    $region14: #{tpu_custom_call.1} parent=1 // pred_check
      _
    $region15: #{tpu_custom_call.1} parent=1 // pred_check_branch
      %47 = sbr.rel (0) target = $region17
    $region16: #{tpu_custom_call.1} parent=1 // pred_region
      %49 = vsyncadd [#allocation4], 0
      %s51 = sshll.u32 [#allocation5], 4
      %s52 = int_to_ptr.vmem [resolvable:$true] %s51
      %s53 = sshll.u32 %s2, 4
      %s54 = int_to_ptr.hbm [resolvable:$true] %s53
      %56 = dma.vmem_to_hbm [thread:$0]  %s52, 256, %s54, [#allocation4]
    $region17: #{tpu_custom_call.1} parent=1 // pred_fallthru
      _
    // Predicated region
    $region18: #{tpu_custom_call.1} parent=1 // pred_check
      _
    $region19: #{tpu_custom_call.1} parent=1 // pred_check_branch
      %58 = sbr.rel (0) target = $region21
    $region20: #{tpu_custom_call.1} parent=1 // pred_region
      %60 = dma.done [#allocation4], 256
    $region21: #{tpu_custom_call.1} parent=1 // pred_fallthru
      _
    %61 = vsyncpa [#allocation3], 1
    %62 = vsyncpa [#allocation4], 1

</llo_original>
